<compile_context>
chip_gen: v6e
topology: v6e:2x2x1
jax: 0.10.0
libtpu: 0.0.40
codegen_flags: <defaults>
</compile_context>

<pallas_src>
import functools

import jax
import jax.numpy as jnp
from jax.experimental import pallas as pl
from jax.experimental.pallas import tpu as pltpu

LANE = 128      # feature / contraction dims padded to multiples of this
SUBLANE = 8


def _round_up(n, m):
    return ((n + m - 1) // m) * m


def _pick_tile(n_pad, want):
    """Largest multiple of LANE that divides n_pad and is <= want (n_pad % LANE == 0)."""
    want = max(LANE, (want // LANE) * LANE)
    t = min(want, n_pad)
    while n_pad % t:
        t -= LANE
    return t


# ----------------------- optional Buffered(1) support probe ------------------
_BUFFERED_OK = None


def _buffered_supported():
    """pl.Buffered(1) on constant-index ("resident") inputs halves their VMEM
    footprint.  Probe once on a tiny kernel and fall back gracefully if this
    JAX/Mosaic build rejects pipeline_mode — the kernel must always run."""
    global _BUFFERED_OK
    if _BUFFERED_OK is None:
        try:
            def _probe(x_ref, o_ref):
                o_ref[...] = x_ref[...] * 2.0

            out = pl.pallas_call(
                _probe,
                out_shape=jax.ShapeDtypeStruct((2 * SUBLANE, LANE), jnp.float32),
                grid=(2,),
                in_specs=[pl.BlockSpec((SUBLANE, LANE), lambda i: (0, 0),
                                       pipeline_mode=pl.Buffered(1))],
                out_specs=pl.BlockSpec((SUBLANE, LANE), lambda i: (i, 0)),
            )(jnp.ones((SUBLANE, LANE), jnp.float32))
            jax.block_until_ready(out)
            _BUFFERED_OK = True
        except Exception:
            _BUFFERED_OK = False
    return _BUFFERED_OK


# ----------------------------------- kernel ----------------------------------
def fused_layer_kernel(a_ref, h_ref, w_ref, b_ref, o_ref, acc_ref, *,
                       tk, apply_relu, h_resident):
    # a_ref : (tm, tk)          bf16 tile of normalized adjacency
    # h_ref : (n_pad, fin_p)    bf16, VMEM-resident   (h_resident=True)
    #         (tk, fin_p)       bf16, K-blocked       (h_resident=False)
    # w_ref : (fin_p, fout_p)   f32, VMEM-resident (stored (in,out): no transpose)
    # b_ref : (1, fout_p)       f32, VMEM-resident
    # o_ref : (tm, fout_p)      output tile (same block index across K -> resident)
    # acc   : (tm, fin_p)       f32 scratch accumulator for A @ H
    k = pl.program_id(1)

    @pl.when(k == 0)
    def _():
        acc_ref[...] = jnp.zeros_like(acc_ref)

    if h_resident:
        koff = pl.multiple_of(k * tk, tk)
        h_blk = h_ref[pl.ds(koff, tk), :]
    else:
        h_blk = h_ref[...]

    # bf16 x bf16 -> f32 accumulation on the MXU.
    acc_ref[...] += jnp.dot(a_ref[...], h_blk, preferred_element_type=jnp.float32)

    @pl.when(k == pl.num_programs(1) - 1)
    def _():
        # Epilogue once per row tile: (A@H) @ W + b (+ReLU), all f32.
        out = jnp.dot(acc_ref[...], w_ref[...], preferred_element_type=jnp.float32)
        out = out + b_ref[...]
        if apply_relu:
            out = jnp.maximum(out, 0.0)
        o_ref[...] = out.astype(o_ref.dtype)


# ---------------------------------- wrappers ---------------------------------
def _gcn_layer(a_pad, h, w_pad, b_pad, *, tm, tk, apply_relu, out_dtype,
               h_resident, use_buffered):
    n_pad = a_pad.shape[0]
    fin_p = h.shape[1]
    fout_p = w_pad.shape[1]
    assert n_pad % tm == 0 and n_pad % tk == 0

    def resident_spec(shape):
        # Constant-index input: single-buffer it when the build supports it.
        if use_buffered:
            return pl.BlockSpec(shape, lambda i, k: (0, 0),
                                pipeline_mode=pl.Buffered(1))
        return pl.BlockSpec(shape, lambda i, k: (0, 0))

    if h_resident:
        h_spec = resident_spec((n_pad, fin_p))
    else:
        h_spec = pl.BlockSpec((tk, fin_p), lambda i, k: (k, 0))

    # VMEM budget (bytes): A tile x2 buffers, H (resident or x2 K-blocks),
    # W + bias resident, output tile x2, f32 accumulator.  Cap at v7x's 64 MiB.
    nb = 1 if use_buffered else 2
    budget = (tm * tk * 2 * 2
              + (n_pad * fin_p * 2 * nb if h_resident else tk * fin_p * 2 * 2)
              + fin_p * fout_p * 4 * nb
              + SUBLANE * fout_p * 4 * nb
              + tm * fout_p * 4 * 2
              + tm * fin_p * 4)
    vmem_limit = int(min(max(2 * budget + (4 << 20), 32 << 20), 64 << 20))

    kernel = functools.partial(fused_layer_kernel, tk=tk,
                               apply_relu=apply_relu, h_resident=h_resident)

    return pl.pallas_call(
        kernel,
        out_shape=jax.ShapeDtypeStruct((n_pad, fout_p), out_dtype),
        grid=(n_pad // tm, n_pad // tk),          # reduction axis last
        in_specs=[
            pl.BlockSpec((tm, tk), lambda i, k: (i, k)),   # A tile (bf16)
            h_spec,                                        # H (bf16)
            resident_spec((fin_p, fout_p)),                # W (f32, resident)
            resident_spec((1, fout_p)),                    # bias (f32, resident)
        ],
        out_specs=pl.BlockSpec((tm, fout_p), lambda i, k: (i, 0)),
        scratch_shapes=[pltpu.VMEM((tm, fin_p), jnp.float32)],
        compiler_params=pltpu.CompilerParams(
            dimension_semantics=("parallel", "arbitrary"),
            vmem_limit_bytes=vmem_limit,
        ),
    )(a_pad, h, w_pad, b_pad)


def gcn_forward(a_hat, x, weights, biases, *, row_tile=256, k_tile=512,
                h_resident_max_bytes=8 << 20, use_buffered=None):
    """GCN forward: relu(conv_i(...)) for i < n_layers-1, plain conv for last.

    a_hat:   (N, N) dense normalized adjacency  D^-1/2 A D^-1/2
    x:       (N, in_dim) node features
    weights: list of (f_in, f_out) matrices (already (in, out) layout)
    biases:  list of (f_out,) vectors
    """
    # TODO(synk): use_ln=True (BatchNorm1d between conv and relu) not implemented;
    #             this covers the default use_ln=False forward path.
    n, in_dim = x.shape
    out_dim = weights[-1].shape[1]

    if use_buffered is None:
        use_buffered = _buffered_supported()

    # Pad N to a multiple of 128 (lane dim of A blocks / sublane dim of H),
    # independent of the tile sizes; tiles must divide n_pad.
    n_pad = _round_up(n, LANE)
    tm = _pick_tile(n_pad, row_tile)
    tk = _pick_tile(n_pad, k_tile)
    # v7x has 2 TensorCores: keep >= 2 row-tile steps so the "parallel" axis
    # actually shards (tm stays a multiple of 16 for bf16 sublane packing).
    if n_pad // tm < 2 and tm % 16 == 0 and tm >= 16:
        tm //= 2

    # One-time layout plumbing.  A and H stream as bf16 (the dominant HBM
    # traffic); zero-padded columns of a_pad guarantee padded-row garbage never
    # reaches real rows, and zero-padded W/bias columns keep padded feature
    # lanes at exactly 0 across layers.
    a_pad = jnp.zeros((n_pad, n_pad), jnp.bfloat16).at[:n, :n].set(
        a_hat.astype(jnp.bfloat16))
    h = jnp.zeros((n_pad, _round_up(in_dim, LANE)), jnp.bfloat16).at[:n, :in_dim].set(
        x.astype(jnp.bfloat16))

    num_layers = len(weights)
    for l in range(num_layers):
        fin, fout = weights[l].shape
        fin_p, fout_p = _round_up(fin, LANE), _round_up(fout, LANE)
        assert h.shape[1] == fin_p
        w_pad = jnp.zeros((fin_p, fout_p), jnp.float32).at[:fin, :fout].set(weights[l])
        b_pad = jnp.zeros((1, fout_p), jnp.float32).at[0, :fout].set(biases[l])
        last = (l == num_layers - 1)
        h_bytes = n_pad * fin_p * 2 * (1 if use_buffered else 2)
        h_resident = h_bytes <= h_resident_max_bytes
        h = _gcn_layer(a_pad, h, w_pad, b_pad, tm=tm, tk=tk,
                       apply_relu=not last,
                       out_dtype=jnp.float32 if last else jnp.bfloat16,
                       h_resident=h_resident, use_buffered=use_buffered)
    return h[:n, :out_dim]


# ----------------------------- reference / init ------------------------------
def gcn_reference(a_hat, x, weights, biases):
    h = x
    num_layers = len(weights)
    for l in range(num_layers):
        h = a_hat @ (h @ weights[l]) + biases[l]
        if l < num_layers - 1:
            h = jnp.maximum(h, 0.0)
    return h


def init_gcn_params(key, in_dim, hid_dim, out_dim, n_layers):
    dims = [in_dim] + [hid_dim] * (n_layers - 1) + [out_dim]
    weights, biases = [], []
    for l in range(n_layers):
        key, kw, kb = jax.random.split(key, 3)
        fi, fo = dims[l], dims[l + 1]
        bound = (6.0 / (fi + fo)) ** 0.5   # xavier_uniform (GraphConv default)
        weights.append(jax.random.uniform(kw, (fi, fo), jnp.float32, -bound, bound))
        biases.append(jax.random.uniform(kb, (fo,), jnp.float32, -0.1, 0.1))
    return weights, biases


def build_normalized_adjacency(key, n, p=0.3):
    # Random symmetric graph + self-loops; A_hat = D^-1/2 A D^-1/2 (norm='both').
    upper = (jax.random.uniform(key, (n, n)) < p).astype(jnp.float32)
    a = jnp.triu(upper, 1)
    a = a + a.T + jnp.eye(n, dtype=jnp.float32)
    deg = jnp.maximum(a.sum(axis=1), 1.0)
    d_inv_sqrt = 1.0 / jnp.sqrt(deg)
    return a * d_inv_sqrt[:, None] * d_inv_sqrt[None, :]


if __name__ == "__main__":
    key = jax.random.PRNGKey(0)
    k_graph, k_x, k_params = jax.random.split(key, 3)

    in_dim, hid_dim, out_dim, n_layers = 32, 32, 16, 3
    weights, biases = init_gcn_params(k_params, in_dim, hid_dim, out_dim, n_layers)

    # Config A: tiny graph — exercises the K-blocked-H path (forced) and the
    # row-tile halving that keeps >= 2 "parallel" steps.
    n_a = 24
    a_hat_a = build_normalized_adjacency(k_graph, n_a)
    x_a = jax.random.normal(k_x, (n_a, in_dim), jnp.float32)
    out_a = gcn_forward(a_hat_a, x_a, weights, biases, h_resident_max_bytes=0)
    jax.block_until_ready(out_a)
    ref_a = gcn_reference(a_hat_a, x_a, weights, biases)
    assert out_a.shape == (n_a, out_dim)
    assert jnp.allclose(out_a, ref_a, atol=2e-2, rtol=2e-2), \
        float(jnp.abs(out_a - ref_a).max())

    # Config B: larger graph — exercises the resident-H path and a multi-step
    # (rows "parallel" x K "arbitrary") grid with the f32 accumulator.
    n_b = 200
    k_graph_b, k_x_b = jax.random.split(k_graph)
    a_hat_b = build_normalized_adjacency(k_graph_b, n_b)
    x_b = jax.random.normal(k_x_b, (n_b, in_dim), jnp.float32)
    out_b = gcn_forward(a_hat_b, x_b, weights, biases, row_tile=128, k_tile=128)
    jax.block_until_ready(out_b)
    ref_b = gcn_reference(a_hat_b, x_b, weights, biases)
    assert out_b.shape == (n_b, out_dim)
    assert jnp.allclose(out_b, ref_b, atol=2e-2, rtol=2e-2), \
        float(jnp.abs(out_b - ref_b).max())

    print("KERNEL_OK")
</pallas_src>

<mosaic_0001>
module attributes {stable_mosaic.version = 11 : i64} {
  func.func @_probe(%arg0: i32, %arg1: memref<8x128xf32, #tpu.memory_space<vmem>>, %arg2: memref<8x128xf32, #tpu.memory_space<vmem>>) attributes {dimension_semantics = [#tpu.dimension_semantics<arbitrary>], iteration_bounds = array<i64: 2>, scalar_prefetch = 0 : i64, scratch_operands = 0 : i64, tpu.core_type = #tpu.core_type<tc>, window_params = [{pipeline_mode = #tpu.pipeline_mode<synchronous>, transform_indices = @transform_0, window_bounds = array<i64: 8, 128>}, {transform_indices = @transform_1, window_bounds = array<i64: 8, 128>}]} {
    %c0 = arith.constant 0 : index
    %c0_0 = arith.constant 0 : index
    %0 = vector.load %arg1[%c0, %c0_0] : memref<8x128xf32, #tpu.memory_space<vmem>>, vector<8x128xf32>
    %cst = arith.constant 2.000000e+00 : f32
    %1 = vector.broadcast %cst : f32 to vector<8x128xf32>
    %2 = arith.mulf %0, %1 : vector<8x128xf32>
    %c0_1 = arith.constant 0 : index
    %c0_2 = arith.constant 0 : index
    %3 = vector.load %arg2[%c0_1, %c0_2] : memref<8x128xf32, #tpu.memory_space<vmem>>, vector<8x128xf32>
    tpu.vector_store %arg2[%c0_1, %c0_2], %2 {strides = array<i32>} : memref<8x128xf32, #tpu.memory_space<vmem>>, vector<8x128xf32>,
    return
  }
  func.func @transform_0(%arg0: i32) -> (i32, i32) {
    %c0_i32 = arith.constant 0 : i32
    %c0_i32_0 = arith.constant 0 : i32
    %c0_i32_1 = arith.constant 0 : i32
    return %c0_i32, %c0_i32_0 : i32, i32
  }
  func.func @transform_1(%arg0: i32) -> (i32, i32) {
    %c0_i32 = arith.constant 0 : i32
    %c0_i32_0 = arith.constant 0 : i32
    return %arg0, %c0_i32 : i32, i32
  }
}

module attributes {stable_mosaic.version = 11 : i64} {
  func.func @fused_layer_kernel(%arg0: i32, %arg1: i32, %arg2: memref<64x128xbf16, #tpu.memory_space<vmem>>, %arg3: memref<128x128xbf16, #tpu.memory_space<vmem>>, %arg4: memref<128x128xf32, #tpu.memory_space<vmem>>, %arg5: memref<1x128xf32, #tpu.memory_space<vmem>>, %arg6: memref<64x128xbf16, #tpu.memory_space<vmem>>, %arg7: memref<64x128xf32, #tpu.memory_space<vmem>>) attributes {dimension_semantics = [#tpu.dimension_semantics<parallel>, #tpu.dimension_semantics<arbitrary>], iteration_bounds = array<i64: 2, 1>, scalar_prefetch = 0 : i64, scratch_operands = 1 : i64, tpu.core_type = #tpu.core_type<tc>, window_params = [{transform_indices = @transform_0, window_bounds = array<i64: 64, 128>}, {transform_indices = @transform_1, window_bounds = array<i64: 128, 128>}, {pipeline_mode = #tpu.pipeline_mode<synchronous>, transform_indices = @transform_2, window_bounds = array<i64: 128, 128>}, {pipeline_mode = #tpu.pipeline_mode<synchronous>, transform_indices = @transform_3, window_bounds = array<i64: 1, 128>}, {transform_indices = @transform_4, window_bounds = array<i64: 64, 128>}]} {
    %c0_i32 = arith.constant 0 : i32
    %0 = arith.cmpi eq, %arg1, %c0_i32 : i32
    %1 = arith.extui %0 : i1 to i32
    %c0_i32_0 = arith.constant 0 : i32
    %2 = arith.cmpi ne, %1, %c0_i32_0 : i32
    scf.if %2 {
      %cst_10 = arith.constant 0.000000e+00 : f32
      %12 = vector.broadcast %cst_10 : f32 to vector<64x128xf32>
      %c0_11 = arith.constant 0 : index
      %c0_12 = arith.constant 0 : index
      %13 = vector.load %arg7[%c0_11, %c0_12] : memref<64x128xf32, #tpu.memory_space<vmem>>, vector<64x128xf32>
      tpu.vector_store %arg7[%c0_11, %c0_12], %12 {strides = array<i32>} : memref<64x128xf32, #tpu.memory_space<vmem>>, vector<64x128xf32>,
    } else {
    }
    %c0 = arith.constant 0 : index
    %c0_1 = arith.constant 0 : index
    %3 = vector.load %arg3[%c0, %c0_1] : memref<128x128xbf16, #tpu.memory_space<vmem>>, vector<128x128xbf16>
    %c0_2 = arith.constant 0 : index
    %c0_3 = arith.constant 0 : index
    %4 = vector.load %arg7[%c0_2, %c0_3] : memref<64x128xf32, #tpu.memory_space<vmem>>, vector<64x128xf32>
    %c0_4 = arith.constant 0 : index
    %c0_5 = arith.constant 0 : index
    %5 = vector.load %arg2[%c0_4, %c0_5] : memref<64x128xbf16, #tpu.memory_space<vmem>>, vector<64x128xbf16>
    %cst = arith.constant dense<0.000000e+00> : vector<64x128xf32>
    %6 = tpu.matmul %5, %3, %cst {dimension_numbers = #tpu.dot_dimension_numbers<[1], [0], [0], [1], [0, 0, 1, 1], [], []>} : vector<64x128xbf16>, vector<128x128xbf16>, vector<64x128xf32> -> vector<64x128xf32>
    %7 = arith.addf %4, %6 : vector<64x128xf32>
    %c0_6 = arith.constant 0 : index
    %c0_7 = arith.constant 0 : index
    %8 = vector.load %arg7[%c0_6, %c0_7] : memref<64x128xf32, #tpu.memory_space<vmem>>, vector<64x128xf32>
    tpu.vector_store %arg7[%c0_6, %c0_7], %7 {strides = array<i32>} : memref<64x128xf32, #tpu.memory_space<vmem>>, vector<64x128xf32>,
    %c0_i32_8 = arith.constant 0 : i32
    %9 = arith.cmpi eq, %arg1, %c0_i32_8 : i32
    %10 = arith.extui %9 : i1 to i32
    %c0_i32_9 = arith.constant 0 : i32
    %11 = arith.cmpi ne, %10, %c0_i32_9 : i32
    scf.if %11 {
      %c0_10 = arith.constant 0 : index
      %c0_11 = arith.constant 0 : index
      %12 = vector.load %arg7[%c0_10, %c0_11] : memref<64x128xf32, #tpu.memory_space<vmem>>, vector<64x128xf32>
      %c0_12 = arith.constant 0 : index
      %c0_13 = arith.constant 0 : index
      %13 = vector.load %arg4[%c0_12, %c0_13] : memref<128x128xf32, #tpu.memory_space<vmem>>, vector<128x128xf32>
      %cst_14 = arith.constant dense<0.000000e+00> : vector<64x128xf32>
      %14 = tpu.matmul %12, %13, %cst_14 {dimension_numbers = #tpu.dot_dimension_numbers<[1], [0], [0], [1], [0, 0, 1, 1], [], []>} : vector<64x128xf32>, vector<128x128xf32>, vector<64x128xf32> -> vector<64x128xf32>
      %c0_15 = arith.constant 0 : index
      %c0_16 = arith.constant 0 : index
      %15 = vector.load %arg5[%c0_15, %c0_16] : memref<1x128xf32, #tpu.memory_space<vmem>>, vector<1x128xf32>
      %16 = vector.broadcast %15 : vector<1x128xf32> to vector<64x128xf32>
      %17 = arith.addf %14, %16 : vector<64x128xf32>
      %cst_17 = arith.constant 0.000000e+00 : f32
      %18 = vector.broadcast %cst_17 : f32 to vector<64x128xf32>
      %19 = arith.maximumf %17, %18 : vector<64x128xf32>
      %20 = arith.truncf %19 : vector<64x128xf32> to vector<64x128xbf16>
      %c0_18 = arith.constant 0 : index
      %c0_19 = arith.constant 0 : index
      %21 = vector.load %arg6[%c0_18, %c0_19] : memref<64x128xbf16, #tpu.memory_space<vmem>>, vector<64x128xbf16>
      tpu.vector_store %arg6[%c0_18, %c0_19], %20 {strides = array<i32>} : memref<64x128xbf16, #tpu.memory_space<vmem>>, vector<64x128xbf16>,
    } else {
    }
    return
  }
  func.func @transform_0(%arg0: i32, %arg1: i32) -> (i32, i32) {
    %c0_i32 = arith.constant 0 : i32
    return %arg0, %arg1 : i32, i32
  }
  func.func @transform_1(%arg0: i32, %arg1: i32) -> (i32, i32) {
    %c0_i32 = arith.constant 0 : i32
    %c0_i32_0 = arith.constant 0 : i32
    return %arg1, %c0_i32 : i32, i32
  }
  func.func @transform_2(%arg0: i32, %arg1: i32) -> (i32, i32) {
    %c0_i32 = arith.constant 0 : i32
    %c0_i32_0 = arith.constant 0 : i32
    %c0_i32_1 = arith.constant 0 : i32
    return %c0_i32, %c0_i32_0 : i32, i32
  }
  func.func @transform_3(%arg0: i32, %arg1: i32) -> (i32, i32) {
    %c0_i32 = arith.constant 0 : i32
    %c0_i32_0 = arith.constant 0 : i32
    %c0_i32_1 = arith.constant 0 : i32
    return %c0_i32, %c0_i32_0 : i32, i32
  }
  func.func @transform_4(%arg0: i32, %arg1: i32) -> (i32, i32) {
    %c0_i32 = arith.constant 0 : i32
    %c0_i32_0 = arith.constant 0 : i32
    return %arg0, %c0_i32 : i32, i32
  }
}

</mosaic_0001>

<llo_original>
// kernel: tpu_custom_call.1
$region0: #{tpu_custom_call.1}
  #allocation0 [shape = 'u32[]', space=smem, size = 0x4, offset = 0x4, fixed_abs, tag = 'smem constant byte address 0x4 - core index']
  #allocation1 [shape = 'u32[144,128]{1,0:T(1,128)}', space=vmem, size = 0x12000, scoped, tag = 'internal scratch']
  %s0 = inlined_call_operand.hbm [shape: f32[8,128], index: 0, kind: input, shape index: {}]
  %s1 = inlined_call_operand.hbm [shape: f32[16,128], index: 1, kind: output, shape index: {}]
  %s2 = sld [smem:[#allocation0]]
  $region41: #{tpu_custom_call.1} parent=0
    _
  %s4 = ssub.s32 1, %s2
  %s5 = scalar_select 0, %s4, %s2
  $region1: #{tpu_custom_call.1} parent=0
    #allocation2 [shape = 'u8[4096]{0}', space=vmem, size = 0x1000, scoped, tag = 'input window, operand 0, single buffered']
    #allocation3 [shape = 's32[2]{0}', space=sflag, size = 0x8, scoped, tag = 'scoped memory for tpu_custom_call.1']
    #allocation4 [shape = 's32[2]{0}', space=sflag, size = 0x8, scoped, tag = 'scoped memory for tpu_custom_call.1']
    #allocation5 [shape = 'u8[8192]{0}', space=vmem, size = 0x2000, scoped, tag = 'output window, operand 0']
    %6 = vsyncpa [#allocation3], 0
    %7 = vsyncpa [#allocation4], 0
    %s8 = scalar_lea.sflag [#allocation4], 1
    %9 = vsyncpa %s8, 0
    loop: start=0, step=1, limit=4
    $region2: #{tpu_custom_call.1} parent=1 // loop_pre_header
      _
    $region3: #{tpu_custom_call.1} parent=1 // loop_header
      %s11 = sphi 0, %s15
      %p12 = scmp.ge.s32.totalorder %s11, 4
      %s19 = sphi 0, %s19
      %s21 = sphi 0, %s19
      %s22 = sphi 0, %s21
      %s36 = sphi 0, %s22
      %s42 = sphi 0, %s44
      %s45 = sphi 0, %s42
      %s46 = sphi 0, %s45
      %s62 = sphi 0, %s46
    $region4: #{tpu_custom_call.1} parent=1 // loop_header_branch
      %14 = sbr.rel (%p12) target = $region8
    $region5: #{tpu_custom_call.1} parent=1 // loop_body
      %s16 = ssub.s32 %s11, 1
      %s17 = ssub.s32 %s11, 2
      %s18 = sadd.s32 %s11, 1
      %s20 = sadd.s32 %s19, 1
      %p23 = scmp.eq.s32.totalorder %s11, 1
      %p24 = scmp.ne.s32.totalorder %s19, %s21
      %p25 = scmp.eq.s32.totalorder %s11, 0
      %p26 = por %p24, %p25
      %p27 = scmp.ne.s32.totalorder %s19, %s21
      %p28 = scmp.eq.s32.totalorder %s16, 1
      %p29 = por %p27, %p28
      %p30 = scmp.ne.s32.totalorder %s21, %s22
      %p31 = scmp.eq.s32.totalorder %s16, 0
      %p32 = por %p30, %p31
      %p33 = scmp.ne.s32.totalorder %s21, %s22
      %p34 = scmp.eq.s32.totalorder %s17, 1
      %p35 = por %p33, %p34
      %p37 = scmp.ne.s32.totalorder %s22, %s36
      %p38 = scmp.eq.s32.totalorder %s17, 0
      %p39 = por %p37, %p38
      %s40 = ssub.s32 %s11, %s18
      %p41 = scmp.eq.s32.totalorder %s40, 0
      %s43 = sadd.s32 %s42, 1
      %s44 = scalar_select %p41, %s42, %s43
      %p47 = pneg %p41
      %p48 = scmp.eq.s32.totalorder %s11, 1
      %p49 = por %p47, %p48
      %p50 = scmp.ne.s32.totalorder %s42, %s45
      %p51 = scmp.eq.s32.totalorder %s11, 0
      %p52 = por %p50, %p51
      %p53 = scmp.ne.s32.totalorder %s42, %s45
      %p54 = scmp.eq.s32.totalorder %s16, 1
      %p55 = por %p53, %p54
      %p56 = scmp.ne.s32.totalorder %s45, %s46
      %p57 = scmp.eq.s32.totalorder %s16, 0
      %p58 = por %p56, %p57
      %p59 = scmp.ne.s32.totalorder %s45, %s46
      %p60 = scmp.eq.s32.totalorder %s17, 1
      %p61 = por %p59, %p60
      %p63 = scmp.ne.s32.totalorder %s46, %s62
      %p64 = scmp.eq.s32.totalorder %s17, 0
      %p65 = por %p63, %p64
      %p66 = scmp.le.s32.totalorder 1, %s11
      %p67 = scmp.lt.s32.totalorder %s11, 3
      %p68 = pnand %p66, %p67
      %p69 = pneg %p68
      // Predicated region
      $region9: #{tpu_custom_call.1} parent=5 // pred_check
        _
      $region10: #{tpu_custom_call.1} parent=5 // pred_check_branch
        %71 = sbr.rel (%p68) target = $region12
      $region11: #{tpu_custom_call.1} parent=5 // pred_region
        %s72 = ssub.s32 %s11, 1
        // Predicated region
        $region13: #{tpu_custom_call.1} parent=11 // pred_check
          %p73 = pneg %p32
        $region14: #{tpu_custom_call.1} parent=11 // pred_check_branch
          %75 = sbr.rel (%p73) target = $region16
        $region15: #{tpu_custom_call.1} parent=11 // pred_region
          %s77 = ssub.s32 128, 128
          %78 = vsyncadd [#allocation3], %s77
          %s80 = sshll.u32 [#allocation2], 4
          %s81 = int_to_ptr.vmem [resolvable:$true] %s80
          %83 = dma.hbm_to_vmem [thread:$0]  %s0, 128, %s81, [#allocation3]
        $region16: #{tpu_custom_call.1} parent=11 // pred_fallthru
          _
      $region12: #{tpu_custom_call.1} parent=5 // pred_fallthru
        _
      %p84 = scmp.lt.s32.totalorder %s11, 2
      // Predicated region
      $region17: #{tpu_custom_call.1} parent=5 // pred_check
        %p85 = pneg %p84
      $region18: #{tpu_custom_call.1} parent=5 // pred_check_branch
        %87 = sbr.rel (%p85) target = $region20
      $region19: #{tpu_custom_call.1} parent=5 // pred_region
        _
      $region20: #{tpu_custom_call.1} parent=5 // pred_fallthru
        _
      %p88 = scmp.le.s32.totalorder 1, %s11
      %p89 = scmp.lt.s32.totalorder %s11, 3
      %p90 = pnand %p88, %p89
      %p91 = pneg %p90
      // Predicated region
      $region21: #{tpu_custom_call.1} parent=5 // pred_check
        _
      $region22: #{tpu_custom_call.1} parent=5 // pred_check_branch
        %93 = sbr.rel (%p90) target = $region24
      $region23: #{tpu_custom_call.1} parent=5 // pred_region
        %s94 = ssub.s32 %s11, 1
        // Predicated region
        $region25: #{tpu_custom_call.1} parent=23 // pred_check
          %p95 = pneg %p32
        $region26: #{tpu_custom_call.1} parent=23 // pred_check_branch
          %97 = sbr.rel (%p95) target = $region28
        $region27: #{tpu_custom_call.1} parent=23 // pred_region
          %98 = dma.done [#allocation3], 128
        $region28: #{tpu_custom_call.1} parent=23 // pred_fallthru
          _
        %p99 = pneg %p32
        %p100 = pneg %p29
        %p101 = pneg %p58
        %p102 = pneg %p55
        %s103 = sand.u32 %s45, 1
        %s104 = scalar_lea.sflag [#allocation4], %s103
        %s105 = sand.u32 %s45, 1
        %s106 = smul.addr %s105, 8
        %s107 = scalar_lea.vmem [#allocation5], %s106
        %v108 = vld [vmem:[#allocation2] sm:$0xff]
        %v109 = vmul.f32 %v108, 2.0
        %110 = vst [vmem:[%s107] sm:$0xff] %v109
        %s111 = sand.u32 %s45, 1
        %s112 = scalar_lea.sflag [#allocation4], %s111
        %s113 = sand.u32 %s45, 1
        %s114 = smul.addr %s113, 8
        %s115 = scalar_lea.vmem [#allocation5], %s114
        // Predicated region
        $region29: #{tpu_custom_call.1} parent=23 // pred_check
          %p116 = pneg %p55
        $region30: #{tpu_custom_call.1} parent=23 // pred_check_branch
          %118 = sbr.rel (%p116) target = $region32
        $region31: #{tpu_custom_call.1} parent=23 // pred_region
          %s120 = ssub.s32 128, 128
          %121 = vsyncadd %s112, %s120
          %s122 = smul.addr %s16, 128
          %s123 = scalar_lea.hbm %s1, %s122
          %s125 = sshll.u32 %s115, 4
          %s126 = int_to_ptr.vmem [resolvable:$true] %s125
          %128 = dma.vmem_to_hbm [thread:$0]  %s126, 128, %s123, %s112
        $region32: #{tpu_custom_call.1} parent=23 // pred_fallthru
          _
      $region24: #{tpu_custom_call.1} parent=5 // pred_fallthru
        _
      %p129 = scmp.le.s32.totalorder 2, %s11
      // Predicated region
      $region33: #{tpu_custom_call.1} parent=5 // pred_check
        %p130 = pneg %p129
      $region34: #{tpu_custom_call.1} parent=5 // pred_check_branch
        %132 = sbr.rel (%p130) target = $region36
      $region35: #{tpu_custom_call.1} parent=5 // pred_region
        %s133 = ssub.s32 %s11, 2
        // Predicated region
        $region37: #{tpu_custom_call.1} parent=35 // pred_check
          %p134 = pneg %p61
        $region38: #{tpu_custom_call.1} parent=35 // pred_check_branch
          %136 = sbr.rel (%p134) target = $region40
        $region39: #{tpu_custom_call.1} parent=35 // pred_region
          %s137 = sand.u32 %s46, 1
          %s138 = scalar_lea.sflag [#allocation4], %s137
          %s139 = sand.u32 %s46, 1
          %s140 = smul.addr %s139, 8
          %s141 = scalar_lea.vmem [#allocation5], %s140
          %142 = dma.done %s138, 128
        $region40: #{tpu_custom_call.1} parent=35 // pred_fallthru
          _
      $region36: #{tpu_custom_call.1} parent=5 // pred_fallthru
        _
    $region6: #{tpu_custom_call.1} parent=1 // loop_footer
      %s15 = sadd.s32 1, %s11
    $region7: #{tpu_custom_call.1} parent=1 // loop_footer_branch
      %10 = sbr.rel target = $region3
    $region8: #{tpu_custom_call.1} parent=1 // loop_exit
      _
    %143 = vsyncpa [#allocation3], 1
    %s144 = scalar_lea.sflag [#allocation3], 1
    %145 = vsyncpa %s144, 1
    %146 = vsyncpa [#allocation4], 1
    %s147 = scalar_lea.sflag [#allocation4], 1
    %148 = vsyncpa %s147, 1

// kernel: tpu_custom_call.1
$region0: #{tpu_custom_call.1}
  #allocation0 [shape = 'u32[]', space=smem, size = 0x4, offset = 0x4, fixed_abs, tag = 'smem constant byte address 0x4 - core index']
  #allocation1 [shape = 'u32[144,128]{1,0:T(1,128)}', space=vmem, size = 0x12000, scoped, tag = 'internal scratch']
  #allocation2 [shape = 'f32[64,128]{1,0:T(8,128)}', space=vmem, size = 0x8000, scoped, tag = 'scratch operand']
  %s0 = inlined_call_operand.hbm [shape: bf16[128,128], index: 0, kind: input, shape index: {}]
  %s1 = inlined_call_operand.hbm [shape: bf16[128,128], index: 1, kind: input, shape index: {}]
  %s2 = inlined_call_operand.hbm [shape: f32[128,128], index: 2, kind: input, shape index: {}]
  %s3 = inlined_call_operand.vmem [shape: f32[1,128], index: 3, kind: input, shape index: {}]
  %s4 = inlined_call_operand.hbm [shape: bf16[128,128], index: 4, kind: output, shape index: {}]
  %s5 = sld [smem:[#allocation0]]
  $region69: #{tpu_custom_call.1} parent=0
    _
  %s7 = ssub.s32 1, %s5
  %s8 = scalar_select 0, %s7, %s5
  $region1: #{tpu_custom_call.1} parent=0
    #allocation3 [shape = 'u8[32768]{0}', space=vmem, size = 0x8000, scoped, tag = 'input window, operand 0']
    #allocation4 [shape = 's32[2]{0}', space=sflag, size = 0x8, scoped, tag = 'scoped memory for tpu_custom_call.1']
    #allocation5 [shape = 's32[2]{0}', space=sflag, size = 0x8, scoped, tag = 'scoped memory for tpu_custom_call.1']
    #allocation6 [shape = 'u8[32768]{0}', space=vmem, size = 0x8000, scoped, tag = 'input window, operand 1, single buffered']
    #allocation7 [shape = 's32[1]{0}', space=sflag, size = 0x4, scoped, tag = 'scoped memory for tpu_custom_call.1']
    #allocation8 [shape = 'u8[65536]{0}', space=vmem, size = 0x10000, scoped, tag = 'input window, operand 2, single buffered']
    #allocation9 [shape = 'u8[32768]{0}', space=vmem, size = 0x8000, scoped, tag = 'output window, operand 0']
    %9 = vsyncpa [#allocation4], 0
    %s10 = scalar_lea.sflag [#allocation4], 1
    %11 = vsyncpa %s10, 0
    %12 = vsyncpa [#allocation7], 0
    %13 = vsyncpa [#allocation5], 0
    %s14 = scalar_lea.sflag [#allocation5], 1
    %15 = vsyncpa %s14, 0
    loop: start=0, step=1, limit=4
    $region2: #{tpu_custom_call.1} parent=1 // loop_pre_header
      _
    $region3: #{tpu_custom_call.1} parent=1 // loop_header
      %s17 = sphi 0, %s21
      %p18 = scmp.ge.s32.totalorder %s17, 4
      %s24 = sphi 0, %s36
      %s25 = sphi 0, %s32
      %s26 = sphi 0, %s24
      %s27 = sphi 0, %s25
      %s28 = sphi 0, %s26
      %s29 = sphi 0, %s27
      %s41 = sphi 0, %s43
      %s44 = sphi 0, %s41
      %s45 = sphi 0, %s44
      %s61 = sphi 0, %s45
      %s67 = sphi 0, %s69
      %s70 = sphi 0, %s67
      %s71 = sphi 0, %s70
      %s87 = sphi 0, %s71
      %s91 = sphi 0, %s91
      %s93 = sphi 0, %s91
      %s94 = sphi 0, %s93
      %s108 = sphi 0, %s94
      %s112 = sphi 0, %s112
      %s114 = sphi 0, %s112
      %s115 = sphi 0, %s114
      %s129 = sphi 0, %s115
      %s135 = sphi 0, %s137
      %s138 = sphi 0, %s135
      %s139 = sphi 0, %s138
      %s155 = sphi 0, %s139
    $region4: #{tpu_custom_call.1} parent=1 // loop_header_branch
      %20 = sbr.rel (%p18) target = $region8
    $region5: #{tpu_custom_call.1} parent=1 // loop_body
      %s22 = ssub.s32 %s17, 1
      %s23 = ssub.s32 %s17, 2
      %s30 = sadd.s32 1, %s25
      %p31 = scmp.ge.s32.totalorder %s30, 1
      %s32 = scalar_select %p31, 0, %s30
      %s33 = sadd.s32 1, %s24
      %s34 = scalar_select %p31, %s33, %s24
      %p35 = scmp.ge.s32.totalorder %s34, 2
      %s36 = scalar_select %p35, 0, %s34
      %s37 = ssub.s32 %s24, %s36
      %s38 = ssub.s32 %s25, %s32
      %s39 = sor.u32 %s37, %s38
      %p40 = scmp.eq.s32.totalorder %s39, 0
      %s42 = sadd.s32 %s41, 1
      %s43 = scalar_select %p40, %s41, %s42
      %p46 = pneg %p40
      %p47 = scmp.eq.s32.totalorder %s17, 1
      %p48 = por %p46, %p47
      %p49 = scmp.ne.s32.totalorder %s41, %s44
      %p50 = scmp.eq.s32.totalorder %s17, 0
      %p51 = por %p49, %p50
      %p52 = scmp.ne.s32.totalorder %s41, %s44
      %p53 = scmp.eq.s32.totalorder %s22, 1
      %p54 = por %p52, %p53
      %p55 = scmp.ne.s32.totalorder %s44, %s45
      %p56 = scmp.eq.s32.totalorder %s22, 0
      %p57 = por %p55, %p56
      %p58 = scmp.ne.s32.totalorder %s44, %s45
      %p59 = scmp.eq.s32.totalorder %s23, 1
      %p60 = por %p58, %p59
      %p62 = scmp.ne.s32.totalorder %s45, %s61
      %p63 = scmp.eq.s32.totalorder %s23, 0
      %p64 = por %p62, %p63
      %s65 = ssub.s32 %s25, %s32
      %p66 = scmp.eq.s32.totalorder %s65, 0
      %s68 = sadd.s32 %s67, 1
      %s69 = scalar_select %p66, %s67, %s68
      %p72 = pneg %p66
      %p73 = scmp.eq.s32.totalorder %s17, 1
      %p74 = por %p72, %p73
      %p75 = scmp.ne.s32.totalorder %s67, %s70
      %p76 = scmp.eq.s32.totalorder %s17, 0
      %p77 = por %p75, %p76
      %p78 = scmp.ne.s32.totalorder %s67, %s70
      %p79 = scmp.eq.s32.totalorder %s22, 1
      %p80 = por %p78, %p79
      %p81 = scmp.ne.s32.totalorder %s70, %s71
      %p82 = scmp.eq.s32.totalorder %s22, 0
      %p83 = por %p81, %p82
      %p84 = scmp.ne.s32.totalorder %s70, %s71
      %p85 = scmp.eq.s32.totalorder %s23, 1
      %p86 = por %p84, %p85
      %p88 = scmp.ne.s32.totalorder %s71, %s87
      %p89 = scmp.eq.s32.totalorder %s23, 0
      %p90 = por %p88, %p89
      %s92 = sadd.s32 %s91, 1
      %p95 = scmp.eq.s32.totalorder %s17, 1
      %p96 = scmp.ne.s32.totalorder %s91, %s93
      %p97 = scmp.eq.s32.totalorder %s17, 0
      %p98 = por %p96, %p97
      %p99 = scmp.ne.s32.totalorder %s91, %s93
      %p100 = scmp.eq.s32.totalorder %s22, 1
      %p101 = por %p99, %p100
      %p102 = scmp.ne.s32.totalorder %s93, %s94
      %p103 = scmp.eq.s32.totalorder %s22, 0
      %p104 = por %p102, %p103
      %p105 = scmp.ne.s32.totalorder %s93, %s94
      %p106 = scmp.eq.s32.totalorder %s23, 1
      %p107 = por %p105, %p106
      %p109 = scmp.ne.s32.totalorder %s94, %s108
      %p110 = scmp.eq.s32.totalorder %s23, 0
      %p111 = por %p109, %p110
      %s113 = sadd.s32 %s112, 1
      %p116 = scmp.eq.s32.totalorder %s17, 1
      %p117 = scmp.ne.s32.totalorder %s112, %s114
      %p118 = scmp.eq.s32.totalorder %s17, 0
      %p119 = por %p117, %p118
      %p120 = scmp.ne.s32.totalorder %s112, %s114
      %p121 = scmp.eq.s32.totalorder %s22, 1
      %p122 = por %p120, %p121
      %p123 = scmp.ne.s32.totalorder %s114, %s115
      %p124 = scmp.eq.s32.totalorder %s22, 0
      %p125 = por %p123, %p124
      %p126 = scmp.ne.s32.totalorder %s114, %s115
      %p127 = scmp.eq.s32.totalorder %s23, 1
      %p128 = por %p126, %p127
      %p130 = scmp.ne.s32.totalorder %s115, %s129
      %p131 = scmp.eq.s32.totalorder %s23, 0
      %p132 = por %p130, %p131
      %s133 = ssub.s32 %s24, %s36
      %p134 = scmp.eq.s32.totalorder %s133, 0
      %s136 = sadd.s32 %s135, 1
      %s137 = scalar_select %p134, %s135, %s136
      %p140 = pneg %p134
      %p141 = scmp.eq.s32.totalorder %s17, 1
      %p142 = por %p140, %p141
      %p143 = scmp.ne.s32.totalorder %s135, %s138
      %p144 = scmp.eq.s32.totalorder %s17, 0
      %p145 = por %p143, %p144
      %p146 = scmp.ne.s32.totalorder %s135, %s138
      %p147 = scmp.eq.s32.totalorder %s22, 1
      %p148 = por %p146, %p147
      %p149 = scmp.ne.s32.totalorder %s138, %s139
      %p150 = scmp.eq.s32.totalorder %s22, 0
      %p151 = por %p149, %p150
      %p152 = scmp.ne.s32.totalorder %s138, %s139
      %p153 = scmp.eq.s32.totalorder %s23, 1
      %p154 = por %p152, %p153
      %p156 = scmp.ne.s32.totalorder %s139, %s155
      %p157 = scmp.eq.s32.totalorder %s23, 0
      %p158 = por %p156, %p157
      %p159 = scmp.le.s32.totalorder 1, %s17
      %p160 = scmp.lt.s32.totalorder %s17, 3
      %p161 = pnand %p159, %p160
      %p162 = pneg %p161
      // Predicated region
      $region9: #{tpu_custom_call.1} parent=5 // pred_check
        _
      $region10: #{tpu_custom_call.1} parent=5 // pred_check_branch
        %164 = sbr.rel (%p161) target = $region12
      $region11: #{tpu_custom_call.1} parent=5 // pred_region
        %s165 = ssub.s32 %s17, 1
        // Predicated region
        $region13: #{tpu_custom_call.1} parent=11 // pred_check
          %p166 = pneg %p83
        $region14: #{tpu_custom_call.1} parent=11 // pred_check_branch
          %168 = sbr.rel (%p166) target = $region16
        $region15: #{tpu_custom_call.1} parent=11 // pred_region
          %s169 = smul.u32 16, %s27
          %s171 = ssub.s32 1024, 1024
          %172 = vsyncadd [#allocation7], %s171
          %s173 = smul.addr %s169, 64
          %s174 = scalar_lea.hbm %s1, %s173
          %s175 = sshll.u32 [#allocation6], 4
          %s176 = int_to_ptr.vmem [resolvable:$true] %s175
          %181 = dma.hbm_to_vmem [thread:$0]  %s174, 1024, %s176, [#allocation7], 64, 64, 4
        $region16: #{tpu_custom_call.1} parent=11 // pred_fallthru
          _
        // Predicated region
        $region17: #{tpu_custom_call.1} parent=11 // pred_check
          %p182 = pneg %p104
        $region18: #{tpu_custom_call.1} parent=11 // pred_check_branch
          %184 = sbr.rel (%p182) target = $region20
        $region19: #{tpu_custom_call.1} parent=11 // pred_region
          %s186 = ssub.s32 2048, 2048
          %187 = vsyncadd [#allocation7], %s186
          %s188 = sshll.u32 [#allocation8], 4
          %s189 = int_to_ptr.vmem [resolvable:$true] %s188
          %194 = dma.hbm_to_vmem [thread:$0]  %s2, 2048, %s189, [#allocation7], 128, 128, 8
        $region20: #{tpu_custom_call.1} parent=11 // pred_fallthru
          _
        // Predicated region
        $region21: #{tpu_custom_call.1} parent=11 // pred_check
          %p195 = pneg %p125
        $region22: #{tpu_custom_call.1} parent=11 // pred_check_branch
          %197 = sbr.rel (%p195) target = $region24
        $region23: #{tpu_custom_call.1} parent=11 // pred_region
          _
        $region24: #{tpu_custom_call.1} parent=11 // pred_fallthru
          _
      $region12: #{tpu_custom_call.1} parent=5 // pred_fallthru
        _
      %p198 = scmp.lt.s32.totalorder %s17, 2
      // Predicated region
      $region25: #{tpu_custom_call.1} parent=5 // pred_check
        %p199 = pneg %p198
      $region26: #{tpu_custom_call.1} parent=5 // pred_check_branch
        %201 = sbr.rel (%p199) target = $region28
      $region27: #{tpu_custom_call.1} parent=5 // pred_region
        // Predicated region
        $region29: #{tpu_custom_call.1} parent=27 // pred_check
          %p202 = pneg %p51
        $region30: #{tpu_custom_call.1} parent=27 // pred_check_branch
          %204 = sbr.rel (%p202) target = $region32
        $region31: #{tpu_custom_call.1} parent=27 // pred_region
          %s205 = sand.u32 %s41, 1
          %s206 = scalar_lea.sflag [#allocation4], %s205
          %s207 = sand.u32 %s41, 1
          %s208 = smul.addr %s207, 32
          %s209 = scalar_lea.vmem [#allocation3], %s208
          %s210 = smul.u32 8, %s24
          %s212 = ssub.s32 512, 512
          %213 = vsyncadd %s206, %s212
          %s214 = sadd.s32 %s25, %s210
          %s215 = smul.addr %s214, 64
          %s216 = scalar_lea.hbm %s0, %s215
          %s217 = sshll.u32 %s209, 4
          %s218 = int_to_ptr.vmem [resolvable:$true] %s217
          %223 = dma.hbm_to_vmem [thread:$0]  %s216, 512, %s218, %s206, 64, 64, 4
        $region32: #{tpu_custom_call.1} parent=27 // pred_fallthru
          _
      $region28: #{tpu_custom_call.1} parent=5 // pred_fallthru
        _
      %p224 = scmp.le.s32.totalorder 1, %s17
      %p225 = scmp.lt.s32.totalorder %s17, 3
      %p226 = pnand %p224, %p225
      %p227 = pneg %p226
      // Predicated region
      $region33: #{tpu_custom_call.1} parent=5 // pred_check
        _
      $region34: #{tpu_custom_call.1} parent=5 // pred_check_branch
        %229 = sbr.rel (%p226) target = $region36
      $region35: #{tpu_custom_call.1} parent=5 // pred_region
        %s230 = ssub.s32 %s17, 1
        %s231 = sand.u32 %s44, 1
        %s232 = scalar_lea.sflag [#allocation4], %s231
        %s233 = sand.u32 %s44, 1
        %s234 = smul.addr %s233, 32
        %s235 = scalar_lea.vmem [#allocation3], %s234
        // Predicated region
        $region37: #{tpu_custom_call.1} parent=35 // pred_check
          %p236 = pneg %p57
        $region38: #{tpu_custom_call.1} parent=35 // pred_check_branch
          %238 = sbr.rel (%p236) target = $region40
        $region39: #{tpu_custom_call.1} parent=35 // pred_region
          %239 = dma.done %s232, 512
        $region40: #{tpu_custom_call.1} parent=35 // pred_fallthru
          _
        // Predicated region
        $region41: #{tpu_custom_call.1} parent=35 // pred_check
          %p240 = pneg %p83
        $region42: #{tpu_custom_call.1} parent=35 // pred_check_branch
          %242 = sbr.rel (%p240) target = $region44
        $region43: #{tpu_custom_call.1} parent=35 // pred_region
          %243 = dma.done [#allocation7], 1024
        $region44: #{tpu_custom_call.1} parent=35 // pred_fallthru
          _
        // Predicated region
        $region45: #{tpu_custom_call.1} parent=35 // pred_check
          %p244 = pneg %p104
        $region46: #{tpu_custom_call.1} parent=35 // pred_check_branch
          %246 = sbr.rel (%p244) target = $region48
        $region47: #{tpu_custom_call.1} parent=35 // pred_region
          %247 = dma.done [#allocation7], 2048
        $region48: #{tpu_custom_call.1} parent=35 // pred_fallthru
          _
        %s248 = sand.u32 %s44, 1
        %s249 = scalar_lea.sflag [#allocation4], %s248
        %s250 = sand.u32 %s44, 1
        %s251 = smul.addr %s250, 32
        %s252 = scalar_lea.vmem [#allocation3], %s251
        %p253 = pneg %p57
        %p254 = pneg %p54
        %p255 = pneg %p83
        %p256 = pneg %p80
        %p257 = pneg %p104
        %p258 = pneg %p101
        %p259 = pneg %p125
        %p260 = pneg %p122
        %p261 = pneg %p151
        %p262 = pneg %p148
        %s263 = sand.u32 %s138, 1
        %s264 = scalar_lea.sflag [#allocation5], %s263
        %s265 = sand.u32 %s138, 1
        %s266 = smul.addr %s265, 32
        %s267 = scalar_lea.vmem [#allocation9], %s266
        %s268 = smul.u32 8, %s26
        %s269 = smul.u32 16, %s27
        %s270 = smul.u32 8, %s26
        %p272 = scmp.eq.s32.totalorder %s27, 0
        // Predicated region
        $region49: #{tpu_custom_call.1} parent=35 // pred_check
          %p273 = pneg %p272
        $region50: #{tpu_custom_call.1} parent=35 // pred_check_branch
          %275 = sbr.rel (%p273) target = $region52
        $region51: #{tpu_custom_call.1} parent=35 // pred_region
          %276 = vst [vmem:[#allocation2] sm:$0xff] 0.0
          %277 = vst [vmem:[#allocation2 + $0x8] sm:$0xff] 0.0
          %278 = vst [vmem:[#allocation2 + $0x10] sm:$0xff] 0.0
          %279 = vst [vmem:[#allocation2 + $0x18] sm:$0xff] 0.0
          %280 = vst [vmem:[#allocation2 + $0x20] sm:$0xff] 0.0
          %281 = vst [vmem:[#allocation2 + $0x28] sm:$0xff] 0.0
          %282 = vst [vmem:[#allocation2 + $0x30] sm:$0xff] 0.0
          %283 = vst [vmem:[#allocation2 + $0x38] sm:$0xff] 0.0
        $region52: #{tpu_custom_call.1} parent=35 // pred_fallthru
          _
        %v284 = vld [vmem:[#allocation6] sm:$0xf]
        %v285 = vld [vmem:[#allocation6 + $0x4] sm:$0xf]
        %v286 = vld [vmem:[#allocation6 + $0x8] sm:$0xf]
        %v287 = vld [vmem:[#allocation6 + $0xc] sm:$0xf]
        %v288 = vld [vmem:[#allocation6 + $0x10] sm:$0xf]
        %v289 = vld [vmem:[#allocation6 + $0x14] sm:$0xf]
        %v290 = vld [vmem:[#allocation6 + $0x18] sm:$0xf]
        %v291 = vld [vmem:[#allocation6 + $0x1c] sm:$0xf]
        %v292 = vld [vmem:[#allocation6 + $0x20] sm:$0xf]
        %v293 = vld [vmem:[#allocation6 + $0x24] sm:$0xf]
        %v294 = vld [vmem:[#allocation6 + $0x28] sm:$0xf]
        %v295 = vld [vmem:[#allocation6 + $0x2c] sm:$0xf]
        %v296 = vld [vmem:[#allocation6 + $0x30] sm:$0xf]
        %v297 = vld [vmem:[#allocation6 + $0x34] sm:$0xf]
        %v298 = vld [vmem:[#allocation6 + $0x38] sm:$0xf]
        %v299 = vld [vmem:[#allocation6 + $0x3c] sm:$0xf]
        %v300 = vld [vmem:[#allocation2] sm:$0xff]
        %v301 = vld [vmem:[#allocation2 + $0x8] sm:$0xff]
        %v302 = vld [vmem:[#allocation2 + $0x10] sm:$0xff]
        %v303 = vld [vmem:[#allocation2 + $0x18] sm:$0xff]
        %v304 = vld [vmem:[#allocation2 + $0x20] sm:$0xff]
        %v305 = vld [vmem:[#allocation2 + $0x28] sm:$0xff]
        %v306 = vld [vmem:[#allocation2 + $0x30] sm:$0xff]
        %v307 = vld [vmem:[#allocation2 + $0x38] sm:$0xff]
        %v308 = vld [vmem:[%s235] sm:$0xf]
        %v309 = vld [vmem:[%s235 + $0x4] sm:$0xf]
        %v310 = vld [vmem:[%s235 + $0x8] sm:$0xf]
        %v311 = vld [vmem:[%s235 + $0xc] sm:$0xf]
        %v312 = vld [vmem:[%s235 + $0x10] sm:$0xf]
        %v313 = vld [vmem:[%s235 + $0x14] sm:$0xf]
        %v314 = vld [vmem:[%s235 + $0x18] sm:$0xf]
        %v315 = vld [vmem:[%s235 + $0x1c] sm:$0xf]
        %v324 = vunpack.c.l.b16 %v308
        %v325 = vunpack.c.l.b16 %v309
        %v326 = vunpack.c.l.b16 %v310
        %v327 = vunpack.c.l.b16 %v311
        %v328 = vunpack.c.l.b16 %v312
        %v329 = vunpack.c.l.b16 %v313
        %v330 = vunpack.c.l.b16 %v314
        %v331 = vunpack.c.l.b16 %v315
        %v332 = vpack.c.b16 %v325, %v324
        %v333 = vpack.c.b16 %v327, %v326
        %v334 = vpack.c.b16 %v329, %v328
        %v335 = vpack.c.b16 %v331, %v330
        %v356 = vunpack.c.l.b16 %v284
        %v357 = vunpack.c.l.b16 %v285
        %v358 = vunpack.c.l.b16 %v286
        %v359 = vunpack.c.l.b16 %v287
        %v360 = vunpack.c.l.b16 %v288
        %v361 = vunpack.c.l.b16 %v289
        %v362 = vunpack.c.l.b16 %v290
        %v363 = vunpack.c.l.b16 %v291
        %v364 = vunpack.c.l.b16 %v292
        %v365 = vunpack.c.l.b16 %v293
        %v366 = vunpack.c.l.b16 %v294
        %v367 = vunpack.c.l.b16 %v295
        %v368 = vunpack.c.l.b16 %v296
        %v369 = vunpack.c.l.b16 %v297
        %v370 = vunpack.c.l.b16 %v298
        %v371 = vunpack.c.l.b16 %v299
        %v372 = vpack.c.b16 %v357, %v356
        %v373 = vpack.c.b16 %v359, %v358
        %v374 = vpack.c.b16 %v361, %v360
        %v375 = vpack.c.b16 %v363, %v362
        %v376 = vpack.c.b16 %v365, %v364
        %v377 = vpack.c.b16 %v367, %v366
        %v378 = vpack.c.b16 %v369, %v368
        %v379 = vpack.c.b16 %v371, %v370
        %388 = vmatprep.subr.bf16.mxu0 0
        %389 = vmatpush1.bf16.msra.mxu0 %v379
        %390 = vmatprep.subr.bf16.mxu0 0
        %391 = vmatpush1.bf16.msra.mxu0 %v378
        %392 = vmatprep.subr.bf16.mxu0 0
        %393 = vmatpush1.bf16.msra.mxu0 %v377
        %394 = vmatprep.subr.bf16.mxu0 0
        %395 = vmatpush1.bf16.msra.mxu0 %v376
        %396 = vmatprep.subr.bf16.mxu0 0
        %397 = vmatpush1.bf16.msra.mxu0 %v375
        %398 = vmatprep.subr.bf16.mxu0 0
        %399 = vmatpush1.bf16.msra.mxu0 %v374
        %400 = vmatprep.subr.bf16.mxu0 0
        %401 = vmatpush1.bf16.msra.mxu0 %v373
        %402 = vmatprep.subr.bf16.mxu0 0
        %403 = vmatpush1.bf16.msra.mxu0 %v372
        %404 = vmatprep.subr.bf16.mxu0 0
        %405 = vmatpush2.bf16.msra.mxu0 0
        %406 = vmatprep.subr.bf16.mxu0 0
        %407 = vmatpush2.bf16.msra.mxu0 0
        %408 = vmatprep.subr.bf16.mxu0 0
        %409 = vmatpush2.bf16.msra.mxu0 0
        %410 = vmatprep.subr.bf16.mxu0 0
        %411 = vmatpush2.bf16.msra.mxu0 0
        %412 = vmatprep.subr.bf16.mxu0 0
        %413 = vmatpush2.bf16.msra.mxu0 0
        %414 = vmatprep.subr.bf16.mxu0 0
        %415 = vmatpush2.bf16.msra.mxu0 0
        %416 = vmatprep.subr.bf16.mxu0 0
        %417 = vmatpush2.bf16.msra.mxu0 0
        %418 = vmatprep.subr.bf16.mxu0 0
        %419 = vmatpush2.bf16.msra.mxu0 0
        %420 = vmatprep.mubr.bf16.mxu0 0
        %421 = vmatmul.mubr.bf16.gmra.mxu0 %v332
        %v422 = vpop.f32.mrf.mxu0
        %v423 = vadd.f32 0.0, %v422
        %v424 = vpop.f32.mrf.mxu0
        %v425 = vpop.f32.mrf.mxu0
        %v426 = vadd.f32 0.0, %v425
        %v427 = vpop.f32.mrf.mxu0
        %428 = vmatprep.mubr.bf16.mxu0 0
        %429 = vmatmul.mubr.bf16.gmra.mxu0 %v333
        %v430 = vpop.f32.mrf.mxu0
        %v431 = vadd.f32 0.0, %v430
        %v432 = vpop.f32.mrf.mxu0
        %v433 = vpop.f32.mrf.mxu0
        %v434 = vadd.f32 0.0, %v433
        %v435 = vpop.f32.mrf.mxu0
        %436 = vmatprep.mubr.bf16.mxu0 0
        %437 = vmatmul.mubr.bf16.gmra.mxu0 %v334
        %v438 = vpop.f32.mrf.mxu0
        %v439 = vadd.f32 0.0, %v438
        %v440 = vpop.f32.mrf.mxu0
        %v441 = vpop.f32.mrf.mxu0
        %v442 = vadd.f32 0.0, %v441
        %v443 = vpop.f32.mrf.mxu0
        %444 = vmatprep.mubr.bf16.mxu0 0
        %445 = vmatmul.mubr.bf16.gmra.mxu0 %v335
        %v446 = vpop.f32.mrf.mxu0
        %v447 = vadd.f32 0.0, %v446
        %v448 = vpop.f32.mrf.mxu0
        %v449 = vpop.f32.mrf.mxu0
        %v450 = vadd.f32 0.0, %v449
        %v451 = vpop.f32.mrf.mxu0
        %452 = vdwg.mxu0
        %v453 = vadd.f32 %v300, %v423
        %v454 = vadd.f32 %v301, %v426
        %v455 = vadd.f32 %v302, %v431
        %v456 = vadd.f32 %v303, %v434
        %v457 = vadd.f32 %v304, %v439
        %v458 = vadd.f32 %v305, %v442
        %v459 = vadd.f32 %v306, %v447
        %v460 = vadd.f32 %v307, %v450
        %461 = vst [vmem:[#allocation2] sm:$0xff] %v453
        %462 = vst [vmem:[#allocation2 + $0x8] sm:$0xff] %v454
        %463 = vst [vmem:[#allocation2 + $0x10] sm:$0xff] %v455
        %464 = vst [vmem:[#allocation2 + $0x18] sm:$0xff] %v456
        %465 = vst [vmem:[#allocation2 + $0x20] sm:$0xff] %v457
        %466 = vst [vmem:[#allocation2 + $0x28] sm:$0xff] %v458
        %467 = vst [vmem:[#allocation2 + $0x30] sm:$0xff] %v459
        %468 = vst [vmem:[#allocation2 + $0x38] sm:$0xff] %v460
        // Predicated region
        $region53: #{tpu_custom_call.1} parent=35 // pred_check
          %p469 = pneg %p272
        $region54: #{tpu_custom_call.1} parent=35 // pred_check_branch
          %471 = sbr.rel (%p469) target = $region56
        $region55: #{tpu_custom_call.1} parent=35 // pred_region
          %v472 = vld [vmem:[#allocation2] sm:$0xff]
          %v473 = vld [vmem:[#allocation2 + $0x8] sm:$0xff]
          %v474 = vld [vmem:[#allocation2 + $0x10] sm:$0xff]
          %v475 = vld [vmem:[#allocation2 + $0x18] sm:$0xff]
          %v476 = vld [vmem:[#allocation2 + $0x20] sm:$0xff]
          %v477 = vld [vmem:[#allocation2 + $0x28] sm:$0xff]
          %v478 = vld [vmem:[#allocation2 + $0x30] sm:$0xff]
          %v479 = vld [vmem:[#allocation2 + $0x38] sm:$0xff]
          %v480 = vld [vmem:[#allocation8] sm:$0xff]
          %v481 = vld [vmem:[#allocation8 + $0x8] sm:$0xff]
          %v482 = vld [vmem:[#allocation8 + $0x10] sm:$0xff]
          %v483 = vld [vmem:[#allocation8 + $0x18] sm:$0xff]
          %v484 = vld [vmem:[#allocation8 + $0x20] sm:$0xff]
          %v485 = vld [vmem:[#allocation8 + $0x28] sm:$0xff]
          %v486 = vld [vmem:[#allocation8 + $0x30] sm:$0xff]
          %v487 = vld [vmem:[#allocation8 + $0x38] sm:$0xff]
          %v488 = vld [vmem:[#allocation8 + $0x40] sm:$0xff]
          %v489 = vld [vmem:[#allocation8 + $0x48] sm:$0xff]
          %v490 = vld [vmem:[#allocation8 + $0x50] sm:$0xff]
          %v491 = vld [vmem:[#allocation8 + $0x58] sm:$0xff]
          %v492 = vld [vmem:[#allocation8 + $0x60] sm:$0xff]
          %v493 = vld [vmem:[#allocation8 + $0x68] sm:$0xff]
          %v494 = vld [vmem:[#allocation8 + $0x70] sm:$0xff]
          %v495 = vld [vmem:[#allocation8 + $0x78] sm:$0xff]
          %v496 = vld [vmem:[%s3] sm:$0x1]
          %v498 = vlaneseq
          %v499 = vshrl.u32 %v498, 7
          %v500 = vsub.s32 0, %v499
          %v501 = vrot.slane %v496, %v500
          %503 = vmatprep.subr.mxu0 0.0
          %504 = vmatpush1.msra.mxu0 %v495
          %505 = vmatprep.subr.mxu0 0.0
          %506 = vmatpush1.msra.mxu0 %v494
          %507 = vmatprep.subr.mxu0 0.0
          %508 = vmatpush1.msra.mxu0 %v493
          %509 = vmatprep.subr.mxu0 0.0
          %510 = vmatpush1.msra.mxu0 %v492
          %511 = vmatprep.subr.mxu0 0.0
          %512 = vmatpush1.msra.mxu0 %v491
          %513 = vmatprep.subr.mxu0 0.0
          %514 = vmatpush1.msra.mxu0 %v490
          %515 = vmatprep.subr.mxu0 0.0
          %516 = vmatpush1.msra.mxu0 %v489
          %517 = vmatprep.subr.mxu0 0.0
          %518 = vmatpush1.msra.mxu0 %v488
          %519 = vmatprep.subr.mxu0 0.0
          %520 = vmatpush1.msra.mxu0 %v487
          %521 = vmatprep.subr.mxu0 0.0
          %522 = vmatpush1.msra.mxu0 %v486
          %523 = vmatprep.subr.mxu0 0.0
          %524 = vmatpush1.msra.mxu0 %v485
          %525 = vmatprep.subr.mxu0 0.0
          %526 = vmatpush1.msra.mxu0 %v484
          %527 = vmatprep.subr.mxu0 0.0
          %528 = vmatpush1.msra.mxu0 %v483
          %529 = vmatprep.subr.mxu0 0.0
          %530 = vmatpush1.msra.mxu0 %v482
          %531 = vmatprep.subr.mxu0 0.0
          %532 = vmatpush1.msra.mxu0 %v481
          %533 = vmatprep.subr.mxu0 0.0
          %534 = vmatpush1.msra.mxu0 %v480
          %535 = vmatprep.subr.mxu0 0.0
          %536 = vmatpush2.msra.mxu0 0.0
          %537 = vmatprep.subr.mxu0 0.0
          %538 = vmatpush2.msra.mxu0 0.0
          %539 = vmatprep.subr.mxu0 0.0
          %540 = vmatpush2.msra.mxu0 0.0
          %541 = vmatprep.subr.mxu0 0.0
          %542 = vmatpush2.msra.mxu0 0.0
          %543 = vmatprep.subr.mxu0 0.0
          %544 = vmatpush2.msra.mxu0 0.0
          %545 = vmatprep.subr.mxu0 0.0
          %546 = vmatpush2.msra.mxu0 0.0
          %547 = vmatprep.subr.mxu0 0.0
          %548 = vmatpush2.msra.mxu0 0.0
          %549 = vmatprep.subr.mxu0 0.0
          %550 = vmatpush2.msra.mxu0 0.0
          %551 = vmatprep.subr.mxu0 0.0
          %552 = vmatpush2.msra.mxu0 0.0
          %553 = vmatprep.subr.mxu0 0.0
          %554 = vmatpush2.msra.mxu0 0.0
          %555 = vmatprep.subr.mxu0 0.0
          %556 = vmatpush2.msra.mxu0 0.0
          %557 = vmatprep.subr.mxu0 0.0
          %558 = vmatpush2.msra.mxu0 0.0
          %559 = vmatprep.subr.mxu0 0.0
          %560 = vmatpush2.msra.mxu0 0.0
          %561 = vmatprep.subr.mxu0 0.0
          %562 = vmatpush2.msra.mxu0 0.0
          %563 = vmatprep.subr.mxu0 0.0
          %564 = vmatpush2.msra.mxu0 0.0
          %565 = vmatprep.subr.mxu0 0.0
          %566 = vmatpush2.msra.mxu0 0.0
          %567 = vmatprep.mubr.f32.mxu0 0.0
          %568 = vmatmul.mubr.f32.gmra.mxu0 %v472
          %v569 = vpop.f32.mrf.mxu0
          %v570 = vadd.f32 %v501, %v569
          %v571 = vpop.f32.mrf.mxu0
          %572 = vmatprep.mubr.f32.mxu0 0.0
          %573 = vmatmul.mubr.f32.gmra.mxu0 %v473
          %v574 = vpop.f32.mrf.mxu0
          %v575 = vadd.f32 %v501, %v574
          %v576 = vpop.f32.mrf.mxu0
          %577 = vmatprep.mubr.f32.mxu0 0.0
          %578 = vmatmul.mubr.f32.gmra.mxu0 %v474
          %v579 = vpop.f32.mrf.mxu0
          %v580 = vadd.f32 %v501, %v579
          %v581 = vpop.f32.mrf.mxu0
          %582 = vmatprep.mubr.f32.mxu0 0.0
          %583 = vmatmul.mubr.f32.gmra.mxu0 %v475
          %v584 = vpop.f32.mrf.mxu0
          %v585 = vadd.f32 %v501, %v584
          %v586 = vpop.f32.mrf.mxu0
          %587 = vmatprep.mubr.f32.mxu0 0.0
          %588 = vmatmul.mubr.f32.gmra.mxu0 %v476
          %v589 = vpop.f32.mrf.mxu0
          %v590 = vadd.f32 %v501, %v589
          %v591 = vpop.f32.mrf.mxu0
          %592 = vmatprep.mubr.f32.mxu0 0.0
          %593 = vmatmul.mubr.f32.gmra.mxu0 %v477
          %v594 = vpop.f32.mrf.mxu0
          %v595 = vadd.f32 %v501, %v594
          %v596 = vpop.f32.mrf.mxu0
          %597 = vmatprep.mubr.f32.mxu0 0.0
          %598 = vmatmul.mubr.f32.gmra.mxu0 %v478
          %v599 = vpop.f32.mrf.mxu0
          %v600 = vadd.f32 %v501, %v599
          %v601 = vpop.f32.mrf.mxu0
          %602 = vmatprep.mubr.f32.mxu0 0.0
          %603 = vmatmul.mubr.f32.gmra.mxu0 %v479
          %v604 = vpop.f32.mrf.mxu0
          %v605 = vadd.f32 %v501, %v604
          %v606 = vpop.f32.mrf.mxu0
          %607 = vdwg.mxu0
          %v608 = vmax.f32 %v570, 0.0
          %v609 = vmax.f32 %v575, 0.0
          %v610 = vmax.f32 %v580, 0.0
          %v611 = vmax.f32 %v585, 0.0
          %v612 = vmax.f32 %v590, 0.0
          %v613 = vmax.f32 %v595, 0.0
          %v614 = vmax.f32 %v600, 0.0
          %v615 = vmax.f32 %v605, 0.0
          %v616 = vpack.c.bf16 %v609, %v608
          %v617 = vpack.c.bf16 %v611, %v610
          %v618 = vpack.c.bf16 %v613, %v612
          %v619 = vpack.c.bf16 %v615, %v614
          %v624 = vunpack.c.l.b16 %v616
          %v625 = vunpack.c.h.b16 %v616
          %v626 = vunpack.c.l.b16 %v617
          %v627 = vunpack.c.h.b16 %v617
          %v628 = vunpack.c.l.b16 %v618
          %v629 = vunpack.c.h.b16 %v618
          %v630 = vunpack.c.l.b16 %v619
          %v631 = vunpack.c.h.b16 %v619
          %v632 = vpack.c.b16 %v624, %v624
          %v633 = vpack.c.b16 %v625, %v625
          %v634 = vpack.c.b16 %v626, %v626
          %v635 = vpack.c.b16 %v627, %v627
          %v636 = vpack.c.b16 %v628, %v628
          %v637 = vpack.c.b16 %v629, %v629
          %v638 = vpack.c.b16 %v630, %v630
          %v639 = vpack.c.b16 %v631, %v631
          %648 = vst [vmem:[%s267] sm:$0xf] %v632
          %649 = vst [vmem:[%s267 + $0x4] sm:$0xf] %v633
          %650 = vst [vmem:[%s267 + $0x8] sm:$0xf] %v634
          %651 = vst [vmem:[%s267 + $0xc] sm:$0xf] %v635
          %652 = vst [vmem:[%s267 + $0x10] sm:$0xf] %v636
          %653 = vst [vmem:[%s267 + $0x14] sm:$0xf] %v637
          %654 = vst [vmem:[%s267 + $0x18] sm:$0xf] %v638
          %655 = vst [vmem:[%s267 + $0x1c] sm:$0xf] %v639
        $region56: #{tpu_custom_call.1} parent=35 // pred_fallthru
          _
        %s656 = sand.u32 %s138, 1
        %s657 = scalar_lea.sflag [#allocation5], %s656
        %s658 = sand.u32 %s138, 1
        %s659 = smul.addr %s658, 32
        %s660 = scalar_lea.vmem [#allocation9], %s659
        // Predicated region
        $region57: #{tpu_custom_call.1} parent=35 // pred_check
          %p661 = pneg %p148
        $region58: #{tpu_custom_call.1} parent=35 // pred_check_branch
          %663 = sbr.rel (%p661) target = $region60
        $region59: #{tpu_custom_call.1} parent=35 // pred_region
          %s664 = smul.u32 8, %s26
          %s666 = ssub.s32 512, 512
          %667 = vsyncadd %s657, %s666
          %s668 = smul.addr %s664, 64
          %s669 = scalar_lea.hbm %s4, %s668
          %s670 = sshll.u32 %s660, 4
          %s671 = int_to_ptr.vmem [resolvable:$true] %s670
          %676 = dma.vmem_to_hbm [thread:$0]  %s671, 512, %s669, %s657, 64, 64, 4
        $region60: #{tpu_custom_call.1} parent=35 // pred_fallthru
          _
      $region36: #{tpu_custom_call.1} parent=5 // pred_fallthru
        _
      %p677 = scmp.le.s32.totalorder 2, %s17
      // Predicated region
      $region61: #{tpu_custom_call.1} parent=5 // pred_check
        %p678 = pneg %p677
      $region62: #{tpu_custom_call.1} parent=5 // pred_check_branch
        %680 = sbr.rel (%p678) target = $region64
      $region63: #{tpu_custom_call.1} parent=5 // pred_region
        %s681 = ssub.s32 %s17, 2
        // Predicated region
        $region65: #{tpu_custom_call.1} parent=63 // pred_check
          %p682 = pneg %p154
        $region66: #{tpu_custom_call.1} parent=63 // pred_check_branch
          %684 = sbr.rel (%p682) target = $region68
        $region67: #{tpu_custom_call.1} parent=63 // pred_region
          %s685 = sand.u32 %s139, 1
          %s686 = scalar_lea.sflag [#allocation5], %s685
          %s687 = sand.u32 %s139, 1
          %s688 = smul.addr %s687, 32
          %s689 = scalar_lea.vmem [#allocation9], %s688
          %690 = dma.done %s686, 512
        $region68: #{tpu_custom_call.1} parent=63 // pred_fallthru
          _
      $region64: #{tpu_custom_call.1} parent=5 // pred_fallthru
        _
    $region6: #{tpu_custom_call.1} parent=1 // loop_footer
      %s21 = sadd.s32 1, %s17
    $region7: #{tpu_custom_call.1} parent=1 // loop_footer_branch
      %16 = sbr.rel target = $region3
    $region8: #{tpu_custom_call.1} parent=1 // loop_exit
      _
    %691 = vsyncpa [#allocation4], 1
    %s692 = scalar_lea.sflag [#allocation4], 1
    %693 = vsyncpa %s692, 1
    %694 = vsyncpa [#allocation7], 1
    %695 = vsyncpa [#allocation5], 1
    %s696 = scalar_lea.sflag [#allocation5], 1
    %697 = vsyncpa %s696, 1

</llo_original>
